<compile_context>
chip_gen: v5e
topology: v5e:2x2
jax: 0.10.0
libtpu: 0.0.40
codegen_flags: <defaults>
</compile_context>

<pallas_src>
import functools

import jax
import jax.numpy as jnp
from jax.experimental import pallas as pl
from jax.experimental.pallas import tpu as pltpu

# Logical (PyTorch) dims and lane-aligned (padded) dims for the small layers.
D_IN, H1, H2, D_OUT = 784, 128, 64, 10
H2_PAD, D_OUT_PAD = 128, 128  # multiples of 128 (lane-dense)

_BB_BUCKETS = (16, 64, 128, 256, 512, 1024)  # static jit arg -> few recompiles


def _round_up(n, m):
    return (n + m - 1) // m * m


def _pick_block_b(B):
    """Batch tile: as large as possible (HBM roofline) while giving >= 2 grid
    steps when B allows it (v7x megacore), drawn from a fixed bucket set."""
    target = max(16, _round_up(-(-B // 2), 16))  # <= ceil(B/2), multiple of 16
    bb = _BB_BUCKETS[0]
    for b in _BB_BUCKETS:
        if b <= target:
            bb = b
    return bb


def mlp_kernel(x_ref, w1_ref, b1_ref, w2_ref, b2_ref, w3_ref, b3_ref, o_ref):
    # Fused 3-layer MLP. bf16 MXU operands, f32 accumulation; bias-add and ReLU
    # on the f32 accumulator, re-cast to bf16 for the next MXU op.
    x = x_ref[...].astype(jnp.bfloat16)                                   # [bb, 784]
    h1 = jnp.dot(x, w1_ref[...], preferred_element_type=jnp.float32) + b1_ref[...]
    h1 = jnp.maximum(h1, 0.0).astype(jnp.bfloat16)                        # [bb, 128]
    h2 = jnp.dot(h1, w2_ref[...], preferred_element_type=jnp.float32) + b2_ref[...]
    h2 = jnp.maximum(h2, 0.0).astype(jnp.bfloat16)                        # [bb, 128]
    out = jnp.dot(h2, w3_ref[...], preferred_element_type=jnp.float32) + b3_ref[...]
    o_ref[...] = out.astype(o_ref.dtype)                                  # [bb, 128] bf16, lane-dense


def prepare_params(params):
    """One-time pad/cast of the weights (call once per parameter set, NOT per forward).

    Zero-padding is exact: padded input/hidden lanes contribute 0, padded output
    lanes are sliced off.
    """
    w1, b1, w2, b2, w3, b3 = params
    w1_p = w1.astype(jnp.bfloat16)                                               # [784, 128]
    b1_p = b1.reshape(1, H1).astype(jnp.float32)                                 # [1, 128]
    w2_p = jnp.pad(w2, ((0, 0), (0, H2_PAD - H2))).astype(jnp.bfloat16)          # [128, 128]
    b2_p = jnp.pad(b2.reshape(1, H2), ((0, 0), (0, H2_PAD - H2))).astype(jnp.float32)
    w3_p = jnp.pad(w3, ((0, H2_PAD - H2), (0, D_OUT_PAD - D_OUT))).astype(jnp.bfloat16)
    b3_p = jnp.pad(b3.reshape(1, D_OUT), ((0, 0), (0, D_OUT_PAD - D_OUT))).astype(jnp.float32)
    return (w1_p, b1_p, w2_p, b2_p, w3_p, b3_p)


@functools.partial(jax.jit, static_argnames=("block_b",))
def _forward(x, prepared, block_b):
    """x: [B, 784] f32, prepared = prepare_params(...)  ->  [B, 10] f32."""
    w1_p, b1_p, w2_p, b2_p, w3_p, b3_p = prepared
    B = x.shape[0]
    grid = (pl.cdiv(B, block_b),)  # ragged last block is masked by Pallas

    # Batch dimension is tiled and streamed directly from the caller's f32 x
    # (no padded/cast copy); weights/biases use constant index maps so they stay
    # VMEM-resident across all grid steps.
    in_specs = [
        pl.BlockSpec((block_b, D_IN), lambda i: (i, 0)),       # x tile, full 784-wide row
        pl.BlockSpec((D_IN, H1), lambda i: (0, 0)),            # W1 bf16
        pl.BlockSpec((1, H1), lambda i: (0, 0)),               # b1 f32
        pl.BlockSpec((H1, H2_PAD), lambda i: (0, 0)),          # W2 bf16 (cols padded to 128)
        pl.BlockSpec((1, H2_PAD), lambda i: (0, 0)),           # b2 f32
        pl.BlockSpec((H2_PAD, D_OUT_PAD), lambda i: (0, 0)),   # W3 bf16 (padded to 128x128)
        pl.BlockSpec((1, D_OUT_PAD), lambda i: (0, 0)),        # b3 f32
    ]
    out_spec = pl.BlockSpec((block_b, D_OUT_PAD), lambda i: (i, 0))

    out_padded = pl.pallas_call(
        mlp_kernel,
        out_shape=jax.ShapeDtypeStruct((B, D_OUT_PAD), jnp.bfloat16),  # bf16 writeback
        grid=grid,
        in_specs=in_specs,
        out_specs=out_spec,
        compiler_params=pltpu.CompilerParams(
            dimension_semantics=("parallel",)),  # batch axis shards across TCs (v7x)
    )(x, w1_p, b1_p, w2_p, b2_p, w3_p, b3_p)

    # Strip the zero-padded output lanes; restore f32 for the caller.
    return out_padded[:, :D_OUT].astype(jnp.float32)


def simple_net_forward(x, prepared_params, block_b=None):
    """Public wrapper: x [B, 784] f32 -> [B, 10] f32."""
    B = x.shape[0]
    bb = _pick_block_b(B) if block_b is None else block_b
    return _forward(x, prepared_params, block_b=bb)


def init_params(key):
    """Deterministic PyTorch-style (Kaiming-uniform-ish) Linear init.

    Weights stored as [in, out] so the kernel computes x @ W + b, matching
    nn.Linear's x @ W.T with W of shape [out, in].
    """
    def linear(key, fan_in, fan_out):
        kw, kb = jax.random.split(key)
        bound = 1.0 / jnp.sqrt(fan_in)
        w = jax.random.uniform(kw, (fan_in, fan_out), jnp.float32, -bound, bound)
        b = jax.random.uniform(kb, (fan_out,), jnp.float32, -bound, bound)
        return w, b

    k1, k2, k3 = jax.random.split(key, 3)
    w1, b1 = linear(k1, D_IN, H1)
    w2, b2 = linear(k2, H1, H2)
    w3, b3 = linear(k3, H2, D_OUT)
    return (w1, b1, w2, b2, w3, b3)


def reference_forward(x, params):
    """Pure-JAX f32 reference matching the PyTorch module semantics."""
    w1, b1, w2, b2, w3, b3 = params
    h1 = jnp.maximum(x @ w1 + b1, 0.0)
    h2 = jnp.maximum(h1 @ w2 + b2, 0.0)
    return h2 @ w3 + b3


if __name__ == "__main__":
    key = jax.random.PRNGKey(0)
    k_params, k_x = jax.random.split(key)

    params = init_params(k_params)
    prepared = prepare_params(params)          # pad/cast once, outside the forward

    B = 16
    x = jax.random.normal(k_x, (B, D_IN), jnp.float32)

    out = simple_net_forward(x, prepared)
    out = jax.block_until_ready(out)

    ref = reference_forward(x, params)
    assert out.shape == (B, D_OUT), out.shape
    # bf16 MXU operands / bf16 writeback with f32 accumulation: allow a bf16-level
    # tolerance against the f32 reference.
    assert jnp.allclose(out, ref, atol=5e-2, rtol=5e-2), (
        "mismatch vs reference; max abs err = "
        f"{float(jnp.max(jnp.abs(out - ref)))}")

    print("KERNEL_OK")
</pallas_src>

<mosaic_0001>
module attributes {stable_mosaic.version = 11 : i64} {
  func.func @mlp_kernel(%arg0: i32, %arg1: memref<16x784xf32, #tpu.memory_space<vmem>>, %arg2: memref<784x128xbf16, #tpu.memory_space<vmem>>, %arg3: memref<1x128xf32, #tpu.memory_space<vmem>>, %arg4: memref<128x128xbf16, #tpu.memory_space<vmem>>, %arg5: memref<1x128xf32, #tpu.memory_space<vmem>>, %arg6: memref<128x128xbf16, #tpu.memory_space<vmem>>, %arg7: memref<1x128xf32, #tpu.memory_space<vmem>>, %arg8: memref<16x128xbf16, #tpu.memory_space<vmem>>) attributes {dimension_semantics = [#tpu.dimension_semantics<parallel>], iteration_bounds = array<i64: 1>, scalar_prefetch = 0 : i64, scratch_operands = 0 : i64, tpu.core_type = #tpu.core_type<tc>, window_params = [{transform_indices = @transform_0, window_bounds = array<i64: 16, 784>}, {pipeline_mode = #tpu.pipeline_mode<synchronous>, transform_indices = @transform_1, window_bounds = array<i64: 784, 128>}, {pipeline_mode = #tpu.pipeline_mode<synchronous>, transform_indices = @transform_2, window_bounds = array<i64: 1, 128>}, {pipeline_mode = #tpu.pipeline_mode<synchronous>, transform_indices = @transform_3, window_bounds = array<i64: 128, 128>}, {pipeline_mode = #tpu.pipeline_mode<synchronous>, transform_indices = @transform_4, window_bounds = array<i64: 1, 128>}, {pipeline_mode = #tpu.pipeline_mode<synchronous>, transform_indices = @transform_5, window_bounds = array<i64: 128, 128>}, {pipeline_mode = #tpu.pipeline_mode<synchronous>, transform_indices = @transform_6, window_bounds = array<i64: 1, 128>}, {transform_indices = @transform_7, window_bounds = array<i64: 16, 128>}]} {
    %c0 = arith.constant 0 : index
    %c0_0 = arith.constant 0 : index
    %0 = vector.load %arg1[%c0, %c0_0] : memref<16x784xf32, #tpu.memory_space<vmem>>, vector<16x784xf32>
    %1 = arith.truncf %0 : vector<16x784xf32> to vector<16x784xbf16>
    %c0_1 = arith.constant 0 : index
    %c0_2 = arith.constant 0 : index
    %2 = vector.load %arg2[%c0_1, %c0_2] : memref<784x128xbf16, #tpu.memory_space<vmem>>, vector<784x128xbf16>
    %cst = arith.constant dense<0.000000e+00> : vector<16x128xf32>
    %3 = tpu.matmul %1, %2, %cst {dimension_numbers = #tpu.dot_dimension_numbers<[1], [0], [0], [1], [0, 0, 1, 1], [], []>} : vector<16x784xbf16>, vector<784x128xbf16>, vector<16x128xf32> -> vector<16x128xf32>
    %c0_3 = arith.constant 0 : index
    %c0_4 = arith.constant 0 : index
    %4 = vector.load %arg3[%c0_3, %c0_4] : memref<1x128xf32, #tpu.memory_space<vmem>>, vector<1x128xf32>
    %5 = vector.broadcast %4 : vector<1x128xf32> to vector<16x128xf32>
    %6 = arith.addf %3, %5 : vector<16x128xf32>
    %cst_5 = arith.constant 0.000000e+00 : f32
    %7 = vector.broadcast %cst_5 : f32 to vector<16x128xf32>
    %8 = arith.maximumf %6, %7 : vector<16x128xf32>
    %9 = arith.truncf %8 : vector<16x128xf32> to vector<16x128xbf16>
    %c0_6 = arith.constant 0 : index
    %c0_7 = arith.constant 0 : index
    %10 = vector.load %arg4[%c0_6, %c0_7] : memref<128x128xbf16, #tpu.memory_space<vmem>>, vector<128x128xbf16>
    %cst_8 = arith.constant dense<0.000000e+00> : vector<16x128xf32>
    %11 = tpu.matmul %9, %10, %cst_8 {dimension_numbers = #tpu.dot_dimension_numbers<[1], [0], [0], [1], [0, 0, 1, 1], [], []>} : vector<16x128xbf16>, vector<128x128xbf16>, vector<16x128xf32> -> vector<16x128xf32>
    %c0_9 = arith.constant 0 : index
    %c0_10 = arith.constant 0 : index
    %12 = vector.load %arg5[%c0_9, %c0_10] : memref<1x128xf32, #tpu.memory_space<vmem>>, vector<1x128xf32>
    %13 = vector.broadcast %12 : vector<1x128xf32> to vector<16x128xf32>
    %14 = arith.addf %11, %13 : vector<16x128xf32>
    %cst_11 = arith.constant 0.000000e+00 : f32
    %15 = vector.broadcast %cst_11 : f32 to vector<16x128xf32>
    %16 = arith.maximumf %14, %15 : vector<16x128xf32>
    %17 = arith.truncf %16 : vector<16x128xf32> to vector<16x128xbf16>
    %c0_12 = arith.constant 0 : index
    %c0_13 = arith.constant 0 : index
    %18 = vector.load %arg6[%c0_12, %c0_13] : memref<128x128xbf16, #tpu.memory_space<vmem>>, vector<128x128xbf16>
    %cst_14 = arith.constant dense<0.000000e+00> : vector<16x128xf32>
    %19 = tpu.matmul %17, %18, %cst_14 {dimension_numbers = #tpu.dot_dimension_numbers<[1], [0], [0], [1], [0, 0, 1, 1], [], []>} : vector<16x128xbf16>, vector<128x128xbf16>, vector<16x128xf32> -> vector<16x128xf32>
    %c0_15 = arith.constant 0 : index
    %c0_16 = arith.constant 0 : index
    %20 = vector.load %arg7[%c0_15, %c0_16] : memref<1x128xf32, #tpu.memory_space<vmem>>, vector<1x128xf32>
    %21 = vector.broadcast %20 : vector<1x128xf32> to vector<16x128xf32>
    %22 = arith.addf %19, %21 : vector<16x128xf32>
    %23 = arith.truncf %22 : vector<16x128xf32> to vector<16x128xbf16>
    %c0_17 = arith.constant 0 : index
    %c0_18 = arith.constant 0 : index
    %24 = vector.load %arg8[%c0_17, %c0_18] : memref<16x128xbf16, #tpu.memory_space<vmem>>, vector<16x128xbf16>
    tpu.vector_store %arg8[%c0_17, %c0_18], %23 {strides = array<i32>} : memref<16x128xbf16, #tpu.memory_space<vmem>>, vector<16x128xbf16>,
    return
  }
  func.func @transform_0(%arg0: i32) -> (i32, i32) {
    %c0_i32 = arith.constant 0 : i32
    %c0_i32_0 = arith.constant 0 : i32
    return %arg0, %c0_i32 : i32, i32
  }
  func.func @transform_1(%arg0: i32) -> (i32, i32) {
    %c0_i32 = arith.constant 0 : i32
    %c0_i32_0 = arith.constant 0 : i32
    %c0_i32_1 = arith.constant 0 : i32
    return %c0_i32, %c0_i32_0 : i32, i32
  }
  func.func @transform_2(%arg0: i32) -> (i32, i32) {
    %c0_i32 = arith.constant 0 : i32
    %c0_i32_0 = arith.constant 0 : i32
    %c0_i32_1 = arith.constant 0 : i32
    return %c0_i32, %c0_i32_0 : i32, i32
  }
  func.func @transform_3(%arg0: i32) -> (i32, i32) {
    %c0_i32 = arith.constant 0 : i32
    %c0_i32_0 = arith.constant 0 : i32
    %c0_i32_1 = arith.constant 0 : i32
    return %c0_i32, %c0_i32_0 : i32, i32
  }
  func.func @transform_4(%arg0: i32) -> (i32, i32) {
    %c0_i32 = arith.constant 0 : i32
    %c0_i32_0 = arith.constant 0 : i32
    %c0_i32_1 = arith.constant 0 : i32
    return %c0_i32, %c0_i32_0 : i32, i32
  }
  func.func @transform_5(%arg0: i32) -> (i32, i32) {
    %c0_i32 = arith.constant 0 : i32
    %c0_i32_0 = arith.constant 0 : i32
    %c0_i32_1 = arith.constant 0 : i32
    return %c0_i32, %c0_i32_0 : i32, i32
  }
  func.func @transform_6(%arg0: i32) -> (i32, i32) {
    %c0_i32 = arith.constant 0 : i32
    %c0_i32_0 = arith.constant 0 : i32
    %c0_i32_1 = arith.constant 0 : i32
    return %c0_i32, %c0_i32_0 : i32, i32
  }
  func.func @transform_7(%arg0: i32) -> (i32, i32) {
    %c0_i32 = arith.constant 0 : i32
    %c0_i32_0 = arith.constant 0 : i32
    return %arg0, %c0_i32 : i32, i32
  }
}

</mosaic_0001>

<llo_original>
// kernel: _forward.1
$region0: #{_forward.1}
  #allocation0 [shape = 'u32[]', space=smem, size = 0x4, offset = 0x4, fixed_abs, tag = 'smem constant byte address 0x4 - core index']
  #allocation1 [shape = 'u32[72,128]{1,0:T(1,128)}', space=vmem, size = 0x9000, scoped, tag = 'internal scratch']
  %s0 = inlined_call_operand.hbm [shape: f32[16,784], index: 0, kind: input, shape index: {}]
  %s1 = inlined_call_operand.hbm [shape: bf16[784,128], index: 1, kind: input, shape index: {}]
  %s2 = inlined_call_operand.vmem [shape: f32[1,128], index: 2, kind: input, shape index: {}]
  %s3 = inlined_call_operand.hbm [shape: bf16[128,128], index: 3, kind: input, shape index: {}]
  %s4 = inlined_call_operand.vmem [shape: f32[1,128], index: 4, kind: input, shape index: {}]
  %s5 = inlined_call_operand.hbm [shape: bf16[128,128], index: 5, kind: input, shape index: {}]
  %s6 = inlined_call_operand.vmem [shape: f32[1,128], index: 6, kind: input, shape index: {}]
  %s7 = inlined_call_operand.vmem [shape: bf16[16,128], index: 7, kind: output, shape index: {}]
  %s8 = sld [smem:[#allocation0]]
  $region54: #{_forward.1} parent=0
    _
  %s10 = ssub.s32 1, %s8
  %s11 = scalar_select 0, %s10, %s8
  $region1: #{_forward.1} parent=0
    #allocation2 [shape = 'u8[57344]{0}', space=vmem, size = 0xe000, scoped, tag = 'input window, operand 0, single buffered']
    #allocation3 [shape = 's32[1]{0}', space=sflag, size = 0x4, scoped, tag = 'scoped memory for _forward.1']
    #allocation4 [shape = 'u8[200704]{0}', space=vmem, size = 0x31000, scoped, tag = 'input window, operand 1, single buffered']
    #allocation5 [shape = 's32[1]{0}', space=sflag, size = 0x4, scoped, tag = 'scoped memory for _forward.1']
    #allocation6 [shape = 'u8[32768]{0}', space=vmem, size = 0x8000, scoped, tag = 'input window, operand 3, single buffered']
    #allocation7 [shape = 'u8[32768]{0}', space=vmem, size = 0x8000, scoped, tag = 'input window, operand 5, single buffered']
    #allocation8 [shape = 's32[1]{0}', space=sflag, size = 0x4, scoped, tag = 'scoped memory for _forward.1']
    %12 = vsyncpa [#allocation3], 0
    %13 = vsyncpa [#allocation5], 0
    %14 = vsyncpa [#allocation8], 0
    // Predicated region
    $region2: #{_forward.1} parent=1 // pred_check
      _
    $region3: #{_forward.1} parent=1 // pred_check_branch
      %16 = sbr.rel (0) target = $region5
    $region4: #{_forward.1} parent=1 // pred_region
      %18 = vsyncadd [#allocation3], 0
      %s19 = sshll.u32 %s0, 4
      %s20 = int_to_ptr.hbm [resolvable:$true] %s19
      %s21 = sshll.u32 [#allocation2], 4
      %s22 = int_to_ptr.vmem [resolvable:$true] %s21
      %27 = dma.hbm_to_vmem [thread:$0]  %s20, 1792, %s22, [#allocation3], 896, 896, 56
    $region5: #{_forward.1} parent=1 // pred_fallthru
      _
    // Predicated region
    $region6: #{_forward.1} parent=1 // pred_check
      _
    $region7: #{_forward.1} parent=1 // pred_check_branch
      %29 = sbr.rel (0) target = $region9
    $region8: #{_forward.1} parent=1 // pred_region
      %31 = vsyncadd [#allocation5], 0
      %s32 = sshll.u32 %s1, 4
      %s33 = int_to_ptr.hbm [resolvable:$true] %s32
      %s34 = sshll.u32 [#allocation4], 4
      %s35 = int_to_ptr.vmem [resolvable:$true] %s34
      %40 = dma.hbm_to_vmem [thread:$0]  %s33, 6272, %s35, [#allocation5], 64, 64, 4
    $region9: #{_forward.1} parent=1 // pred_fallthru
      _
    // Predicated region
    $region10: #{_forward.1} parent=1 // pred_check
      _
    $region11: #{_forward.1} parent=1 // pred_check_branch
      %42 = sbr.rel (0) target = $region13
    $region12: #{_forward.1} parent=1 // pred_region
      _
    $region13: #{_forward.1} parent=1 // pred_fallthru
      _
    // Predicated region
    $region14: #{_forward.1} parent=1 // pred_check
      _
    $region15: #{_forward.1} parent=1 // pred_check_branch
      %44 = sbr.rel (0) target = $region17
    $region16: #{_forward.1} parent=1 // pred_region
      %46 = vsyncadd [#allocation5], 0
      %s47 = sshll.u32 %s3, 4
      %s48 = int_to_ptr.hbm [resolvable:$true] %s47
      %s49 = sshll.u32 [#allocation6], 4
      %s50 = int_to_ptr.vmem [resolvable:$true] %s49
      %55 = dma.hbm_to_vmem [thread:$0]  %s48, 1024, %s50, [#allocation5], 64, 64, 4
    $region17: #{_forward.1} parent=1 // pred_fallthru
      _
    // Predicated region
    $region18: #{_forward.1} parent=1 // pred_check
      _
    $region19: #{_forward.1} parent=1 // pred_check_branch
      %57 = sbr.rel (0) target = $region21
    $region20: #{_forward.1} parent=1 // pred_region
      _
    $region21: #{_forward.1} parent=1 // pred_fallthru
      _
    // Predicated region
    $region22: #{_forward.1} parent=1 // pred_check
      _
    $region23: #{_forward.1} parent=1 // pred_check_branch
      %59 = sbr.rel (0) target = $region25
    $region24: #{_forward.1} parent=1 // pred_region
      %61 = vsyncadd [#allocation8], 0
      %s62 = sshll.u32 %s5, 4
      %s63 = int_to_ptr.hbm [resolvable:$true] %s62
      %s64 = sshll.u32 [#allocation7], 4
      %s65 = int_to_ptr.vmem [resolvable:$true] %s64
      %70 = dma.hbm_to_vmem [thread:$0]  %s63, 1024, %s65, [#allocation8], 64, 64, 4
    $region25: #{_forward.1} parent=1 // pred_fallthru
      _
    // Predicated region
    $region26: #{_forward.1} parent=1 // pred_check
      _
    $region27: #{_forward.1} parent=1 // pred_check_branch
      %72 = sbr.rel (0) target = $region29
    $region28: #{_forward.1} parent=1 // pred_region
      _
    $region29: #{_forward.1} parent=1 // pred_fallthru
      _
    // Predicated region
    $region30: #{_forward.1} parent=1 // pred_check
      _
    $region31: #{_forward.1} parent=1 // pred_check_branch
      %74 = sbr.rel (0) target = $region33
    $region32: #{_forward.1} parent=1 // pred_region
      %76 = dma.done [#allocation3], 1792
    $region33: #{_forward.1} parent=1 // pred_fallthru
      _
    // Predicated region
    $region34: #{_forward.1} parent=1 // pred_check
      _
    $region35: #{_forward.1} parent=1 // pred_check_branch
      %78 = sbr.rel (0) target = $region37
    $region36: #{_forward.1} parent=1 // pred_region
      %80 = dma.done [#allocation5], 6272
    $region37: #{_forward.1} parent=1 // pred_fallthru
      _
    // Predicated region
    $region38: #{_forward.1} parent=1 // pred_check
      _
    $region39: #{_forward.1} parent=1 // pred_check_branch
      %82 = sbr.rel (0) target = $region41
    $region40: #{_forward.1} parent=1 // pred_region
      %84 = dma.done [#allocation5], 1024
    $region41: #{_forward.1} parent=1 // pred_fallthru
      _
    // Predicated region
    $region42: #{_forward.1} parent=1 // pred_check
      _
    $region43: #{_forward.1} parent=1 // pred_check_branch
      %86 = sbr.rel (0) target = $region45
    $region44: #{_forward.1} parent=1 // pred_region
      %88 = dma.done [#allocation8], 1024
    $region45: #{_forward.1} parent=1 // pred_fallthru
      _
    %v90 = vld [vmem:[#allocation2] sm:$0xff]
    %v91 = vld [vmem:[#allocation2 + $0x8] sm:$0xff]
    %v92 = vld [vmem:[#allocation2 + $0x10] sm:$0xff]
    %v93 = vld [vmem:[#allocation2 + $0x18] sm:$0xff]
    %v94 = vld [vmem:[#allocation2 + $0x20] sm:$0xff]
    %v95 = vld [vmem:[#allocation2 + $0x28] sm:$0xff]
    %v96 = vld [vmem:[#allocation2 + $0x30] sm:$0xff]
    %v97 = vld [vmem:[#allocation2 + $0x38] sm:$0xff]
    %v98 = vld [vmem:[#allocation2 + $0x40] sm:$0xff]
    %v99 = vld [vmem:[#allocation2 + $0x48] sm:$0xff]
    %v100 = vld [vmem:[#allocation2 + $0x50] sm:$0xff]
    %v101 = vld [vmem:[#allocation2 + $0x58] sm:$0xff]
    %v102 = vld [vmem:[#allocation2 + $0x60] sm:$0xff]
    %v103 = vld [vmem:[#allocation2 + $0x68] sm:$0xff]
    %v104 = vpack.c.bf16 %v97, %v90
    %v105 = vpack.c.bf16 %v98, %v91
    %v106 = vpack.c.bf16 %v99, %v92
    %v107 = vpack.c.bf16 %v100, %v93
    %v108 = vpack.c.bf16 %v101, %v94
    %v109 = vpack.c.bf16 %v102, %v95
    %v110 = vpack.c.bf16 %v103, %v96
    %v111 = vld [vmem:[#allocation4] sm:$0xf]
    %v112 = vld [vmem:[#allocation4 + $0x4] sm:$0xf]
    %v113 = vld [vmem:[#allocation4 + $0x8] sm:$0xf]
    %v114 = vld [vmem:[#allocation4 + $0xc] sm:$0xf]
    %v115 = vld [vmem:[#allocation4 + $0x10] sm:$0xf]
    %v116 = vld [vmem:[#allocation4 + $0x14] sm:$0xf]
    %v117 = vld [vmem:[#allocation4 + $0x18] sm:$0xf]
    %v118 = vld [vmem:[#allocation4 + $0x1c] sm:$0xf]
    %v119 = vld [vmem:[#allocation4 + $0x20] sm:$0xf]
    %v120 = vld [vmem:[#allocation4 + $0x24] sm:$0xf]
    %v121 = vld [vmem:[#allocation4 + $0x28] sm:$0xf]
    %v122 = vld [vmem:[#allocation4 + $0x2c] sm:$0xf]
    %v123 = vld [vmem:[#allocation4 + $0x30] sm:$0xf]
    %v124 = vld [vmem:[#allocation4 + $0x34] sm:$0xf]
    %v125 = vld [vmem:[#allocation4 + $0x38] sm:$0xf]
    %v126 = vld [vmem:[#allocation4 + $0x3c] sm:$0xf]
    %v127 = vld [vmem:[#allocation4 + $0x40] sm:$0xf]
    %v128 = vld [vmem:[#allocation4 + $0x44] sm:$0xf]
    %v129 = vld [vmem:[#allocation4 + $0x48] sm:$0xf]
    %v130 = vld [vmem:[#allocation4 + $0x4c] sm:$0xf]
    %v131 = vld [vmem:[#allocation4 + $0x50] sm:$0xf]
    %v132 = vld [vmem:[#allocation4 + $0x54] sm:$0xf]
    %v133 = vld [vmem:[#allocation4 + $0x58] sm:$0xf]
    %v134 = vld [vmem:[#allocation4 + $0x5c] sm:$0xf]
    %v135 = vld [vmem:[#allocation4 + $0x60] sm:$0xf]
    %v136 = vld [vmem:[#allocation4 + $0x64] sm:$0xf]
    %v137 = vld [vmem:[#allocation4 + $0x68] sm:$0xf]
    %v138 = vld [vmem:[#allocation4 + $0x6c] sm:$0xf]
    %v139 = vld [vmem:[#allocation4 + $0x70] sm:$0xf]
    %v140 = vld [vmem:[#allocation4 + $0x74] sm:$0xf]
    %v141 = vld [vmem:[#allocation4 + $0x78] sm:$0xf]
    %v142 = vld [vmem:[#allocation4 + $0x7c] sm:$0xf]
    %v143 = vld [vmem:[#allocation4 + $0x80] sm:$0xf]
    %v144 = vld [vmem:[#allocation4 + $0x84] sm:$0xf]
    %v145 = vld [vmem:[#allocation4 + $0x88] sm:$0xf]
    %v146 = vld [vmem:[#allocation4 + $0x8c] sm:$0xf]
    %v147 = vld [vmem:[#allocation4 + $0x90] sm:$0xf]
    %v148 = vld [vmem:[#allocation4 + $0x94] sm:$0xf]
    %v149 = vld [vmem:[#allocation4 + $0x98] sm:$0xf]
    %v150 = vld [vmem:[#allocation4 + $0x9c] sm:$0xf]
    %v151 = vld [vmem:[#allocation4 + $0xa0] sm:$0xf]
    %v152 = vld [vmem:[#allocation4 + $0xa4] sm:$0xf]
    %v153 = vld [vmem:[#allocation4 + $0xa8] sm:$0xf]
    %v154 = vld [vmem:[#allocation4 + $0xac] sm:$0xf]
    %v155 = vld [vmem:[#allocation4 + $0xb0] sm:$0xf]
    %v156 = vld [vmem:[#allocation4 + $0xb4] sm:$0xf]
    %v157 = vld [vmem:[#allocation4 + $0xb8] sm:$0xf]
    %v158 = vld [vmem:[#allocation4 + $0xbc] sm:$0xf]
    %v159 = vld [vmem:[#allocation4 + $0xc0] sm:$0xf]
    %v160 = vld [vmem:[#allocation4 + $0xc4] sm:$0xf]
    %v161 = vld [vmem:[#allocation4 + $0xc8] sm:$0xf]
    %v162 = vld [vmem:[#allocation4 + $0xcc] sm:$0xf]
    %v163 = vld [vmem:[#allocation4 + $0xd0] sm:$0xf]
    %v164 = vld [vmem:[#allocation4 + $0xd4] sm:$0xf]
    %v165 = vld [vmem:[#allocation4 + $0xd8] sm:$0xf]
    %v166 = vld [vmem:[#allocation4 + $0xdc] sm:$0xf]
    %v167 = vld [vmem:[#allocation4 + $0xe0] sm:$0xf]
    %v168 = vld [vmem:[#allocation4 + $0xe4] sm:$0xf]
    %v169 = vld [vmem:[#allocation4 + $0xe8] sm:$0xf]
    %v170 = vld [vmem:[#allocation4 + $0xec] sm:$0xf]
    %v171 = vld [vmem:[#allocation4 + $0xf0] sm:$0xf]
    %v172 = vld [vmem:[#allocation4 + $0xf4] sm:$0xf]
    %v173 = vld [vmem:[#allocation4 + $0xf8] sm:$0xf]
    %v174 = vld [vmem:[#allocation4 + $0xfc] sm:$0xf]
    %v175 = vld [vmem:[#allocation4 + $0x100] sm:$0xf]
    %v176 = vld [vmem:[#allocation4 + $0x104] sm:$0xf]
    %v177 = vld [vmem:[#allocation4 + $0x108] sm:$0xf]
    %v178 = vld [vmem:[#allocation4 + $0x10c] sm:$0xf]
    %v179 = vld [vmem:[#allocation4 + $0x110] sm:$0xf]
    %v180 = vld [vmem:[#allocation4 + $0x114] sm:$0xf]
    %v181 = vld [vmem:[#allocation4 + $0x118] sm:$0xf]
    %v182 = vld [vmem:[#allocation4 + $0x11c] sm:$0xf]
    %v183 = vld [vmem:[#allocation4 + $0x120] sm:$0xf]
    %v184 = vld [vmem:[#allocation4 + $0x124] sm:$0xf]
    %v185 = vld [vmem:[#allocation4 + $0x128] sm:$0xf]
    %v186 = vld [vmem:[#allocation4 + $0x12c] sm:$0xf]
    %v187 = vld [vmem:[#allocation4 + $0x130] sm:$0xf]
    %v188 = vld [vmem:[#allocation4 + $0x134] sm:$0xf]
    %v189 = vld [vmem:[#allocation4 + $0x138] sm:$0xf]
    %v190 = vld [vmem:[#allocation4 + $0x13c] sm:$0xf]
    %v191 = vld [vmem:[#allocation4 + $0x140] sm:$0xf]
    %v192 = vld [vmem:[#allocation4 + $0x144] sm:$0xf]
    %v193 = vld [vmem:[#allocation4 + $0x148] sm:$0xf]
    %v194 = vld [vmem:[#allocation4 + $0x14c] sm:$0xf]
    %v195 = vld [vmem:[#allocation4 + $0x150] sm:$0xf]
    %v196 = vld [vmem:[#allocation4 + $0x154] sm:$0xf]
    %v197 = vld [vmem:[#allocation4 + $0x158] sm:$0xf]
    %v198 = vld [vmem:[#allocation4 + $0x15c] sm:$0xf]
    %v199 = vld [vmem:[#allocation4 + $0x160] sm:$0xf]
    %v200 = vld [vmem:[#allocation4 + $0x164] sm:$0xf]
    %v201 = vld [vmem:[#allocation4 + $0x168] sm:$0xf]
    %v202 = vld [vmem:[#allocation4 + $0x16c] sm:$0xf]
    %v203 = vld [vmem:[#allocation4 + $0x170] sm:$0xf]
    %v204 = vld [vmem:[#allocation4 + $0x174] sm:$0xf]
    %v205 = vld [vmem:[#allocation4 + $0x178] sm:$0xf]
    %v206 = vld [vmem:[#allocation4 + $0x17c] sm:$0xf]
    %v207 = vld [vmem:[#allocation4 + $0x180] sm:$0xf]
    %v208 = vld [vmem:[#allocation4 + $0x184] sm:$0xf]
    %v209 = vld [vmem:[%s2] sm:$0x1]
    %v211 = vperm.slane %v209, 0
    %v311 = vunpack.c.l.b16 %v111
    %v312 = vunpack.c.l.b16 %v112
    %v313 = vunpack.c.l.b16 %v113
    %v314 = vunpack.c.l.b16 %v114
    %v315 = vunpack.c.l.b16 %v115
    %v316 = vunpack.c.l.b16 %v116
    %v317 = vunpack.c.l.b16 %v117
    %v318 = vunpack.c.l.b16 %v118
    %v319 = vunpack.c.l.b16 %v119
    %v320 = vunpack.c.l.b16 %v120
    %v321 = vunpack.c.l.b16 %v121
    %v322 = vunpack.c.l.b16 %v122
    %v323 = vunpack.c.l.b16 %v123
    %v324 = vunpack.c.l.b16 %v124
    %v325 = vunpack.c.l.b16 %v125
    %v326 = vunpack.c.l.b16 %v126
    %v327 = vunpack.c.l.b16 %v127
    %v328 = vunpack.c.l.b16 %v128
    %v329 = vunpack.c.l.b16 %v129
    %v330 = vunpack.c.l.b16 %v130
    %v331 = vunpack.c.l.b16 %v131
    %v332 = vunpack.c.l.b16 %v132
    %v333 = vunpack.c.l.b16 %v133
    %v334 = vunpack.c.l.b16 %v134
    %v335 = vunpack.c.l.b16 %v135
    %v336 = vunpack.c.l.b16 %v136
    %v337 = vunpack.c.l.b16 %v137
    %v338 = vunpack.c.l.b16 %v138
    %v339 = vunpack.c.l.b16 %v139
    %v340 = vunpack.c.l.b16 %v140
    %v341 = vunpack.c.l.b16 %v141
    %v342 = vunpack.c.l.b16 %v142
    %v343 = vunpack.c.l.b16 %v143
    %v344 = vunpack.c.l.b16 %v144
    %v345 = vunpack.c.l.b16 %v145
    %v346 = vunpack.c.l.b16 %v146
    %v347 = vunpack.c.l.b16 %v147
    %v348 = vunpack.c.l.b16 %v148
    %v349 = vunpack.c.l.b16 %v149
    %v350 = vunpack.c.l.b16 %v150
    %v351 = vunpack.c.l.b16 %v151
    %v352 = vunpack.c.l.b16 %v152
    %v353 = vunpack.c.l.b16 %v153
    %v354 = vunpack.c.l.b16 %v154
    %v355 = vunpack.c.l.b16 %v155
    %v356 = vunpack.c.l.b16 %v156
    %v357 = vunpack.c.l.b16 %v157
    %v358 = vunpack.c.l.b16 %v158
    %v359 = vunpack.c.l.b16 %v159
    %v360 = vunpack.c.l.b16 %v160
    %v361 = vunpack.c.l.b16 %v161
    %v362 = vunpack.c.l.b16 %v162
    %v363 = vunpack.c.l.b16 %v163
    %v364 = vunpack.c.l.b16 %v164
    %v365 = vunpack.c.l.b16 %v165
    %v366 = vunpack.c.l.b16 %v166
    %v367 = vunpack.c.l.b16 %v167
    %v368 = vunpack.c.l.b16 %v168
    %v369 = vunpack.c.l.b16 %v169
    %v370 = vunpack.c.l.b16 %v170
    %v371 = vunpack.c.l.b16 %v171
    %v372 = vunpack.c.l.b16 %v172
    %v373 = vunpack.c.l.b16 %v173
    %v374 = vunpack.c.l.b16 %v174
    %v375 = vunpack.c.l.b16 %v175
    %v376 = vunpack.c.l.b16 %v176
    %v377 = vunpack.c.l.b16 %v177
    %v378 = vunpack.c.l.b16 %v178
    %v379 = vunpack.c.l.b16 %v179
    %v380 = vunpack.c.l.b16 %v180
    %v381 = vunpack.c.l.b16 %v181
    %v382 = vunpack.c.l.b16 %v182
    %v383 = vunpack.c.l.b16 %v183
    %v384 = vunpack.c.l.b16 %v184
    %v385 = vunpack.c.l.b16 %v185
    %v386 = vunpack.c.l.b16 %v186
    %v387 = vunpack.c.l.b16 %v187
    %v388 = vunpack.c.l.b16 %v188
    %v389 = vunpack.c.l.b16 %v189
    %v390 = vunpack.c.l.b16 %v190
    %v391 = vunpack.c.l.b16 %v191
    %v392 = vunpack.c.l.b16 %v192
    %v393 = vunpack.c.l.b16 %v193
    %v394 = vunpack.c.l.b16 %v194
    %v395 = vunpack.c.l.b16 %v195
    %v396 = vunpack.c.l.b16 %v196
    %v397 = vunpack.c.l.b16 %v197
    %v398 = vunpack.c.l.b16 %v198
    %v399 = vunpack.c.l.b16 %v199
    %v400 = vunpack.c.l.b16 %v200
    %v401 = vunpack.c.l.b16 %v201
    %v402 = vunpack.c.l.b16 %v202
    %v403 = vunpack.c.l.b16 %v203
    %v404 = vunpack.c.l.b16 %v204
    %v405 = vunpack.c.l.b16 %v205
    %v406 = vunpack.c.l.b16 %v206
    %v407 = vunpack.c.l.b16 %v207
    %v408 = vunpack.c.l.b16 %v208
    %v409 = vpack.c.b16 %v312, %v311
    %v410 = vpack.c.b16 %v314, %v313
    %v411 = vpack.c.b16 %v316, %v315
    %v412 = vpack.c.b16 %v318, %v317
    %v413 = vpack.c.b16 %v320, %v319
    %v414 = vpack.c.b16 %v322, %v321
    %v415 = vpack.c.b16 %v324, %v323
    %v416 = vpack.c.b16 %v326, %v325
    %v417 = vpack.c.b16 %v328, %v327
    %v418 = vpack.c.b16 %v330, %v329
    %v419 = vpack.c.b16 %v332, %v331
    %v420 = vpack.c.b16 %v334, %v333
    %v421 = vpack.c.b16 %v336, %v335
    %v422 = vpack.c.b16 %v338, %v337
    %v423 = vpack.c.b16 %v340, %v339
    %v424 = vpack.c.b16 %v342, %v341
    %v425 = vpack.c.b16 %v344, %v343
    %v426 = vpack.c.b16 %v346, %v345
    %v427 = vpack.c.b16 %v348, %v347
    %v428 = vpack.c.b16 %v350, %v349
    %v429 = vpack.c.b16 %v352, %v351
    %v430 = vpack.c.b16 %v354, %v353
    %v431 = vpack.c.b16 %v356, %v355
    %v432 = vpack.c.b16 %v358, %v357
    %v433 = vpack.c.b16 %v360, %v359
    %v434 = vpack.c.b16 %v362, %v361
    %v435 = vpack.c.b16 %v364, %v363
    %v436 = vpack.c.b16 %v366, %v365
    %v437 = vpack.c.b16 %v368, %v367
    %v438 = vpack.c.b16 %v370, %v369
    %v439 = vpack.c.b16 %v372, %v371
    %v440 = vpack.c.b16 %v374, %v373
    %v441 = vpack.c.b16 %v376, %v375
    %v442 = vpack.c.b16 %v378, %v377
    %v443 = vpack.c.b16 %v380, %v379
    %v444 = vpack.c.b16 %v382, %v381
    %v445 = vpack.c.b16 %v384, %v383
    %v446 = vpack.c.b16 %v386, %v385
    %v447 = vpack.c.b16 %v388, %v387
    %v448 = vpack.c.b16 %v390, %v389
    %v449 = vpack.c.b16 %v392, %v391
    %v450 = vpack.c.b16 %v394, %v393
    %v451 = vpack.c.b16 %v396, %v395
    %v452 = vpack.c.b16 %v398, %v397
    %v453 = vpack.c.b16 %v400, %v399
    %v454 = vpack.c.b16 %v402, %v401
    %v455 = vpack.c.b16 %v404, %v403
    %v456 = vpack.c.b16 %v406, %v405
    %v457 = vpack.c.b16 %v408, %v407
    %vm507 = vcmask 130048
    %v509 = vsel %vm507, %v110, 0
    %511 = vmatpush.bf16.msra.mxu0 %v416
    %512 = vmatpush.bf16.msra.mxu0 %v415
    %513 = vmatpush.bf16.msra.mxu0 %v414
    %514 = vmatpush.bf16.msra.mxu0 %v413
    %515 = vmatpush.bf16.msra.mxu0 %v412
    %516 = vmatpush.bf16.msra.mxu0 %v411
    %517 = vmatpush.bf16.msra.mxu0 %v410
    %518 = vmatpush.bf16.msra.mxu0 %v409
    %519 = vmatmul.bf16.gmra.mxu0 %v104
    %v520 = vpop.f32.mrf.mxu0
    %v521 = vadd.f32 %v211, %v520
    %v522 = vpop.f32.mrf.mxu0
    %v523 = vadd.f32 %v211, %v522
    %524 = vdwg.mxu0
    %525 = vmatpush.bf16.msra.mxu0 %v424
    %526 = vmatpush.bf16.msra.mxu0 %v423
    %527 = vmatpush.bf16.msra.mxu0 %v422
    %528 = vmatpush.bf16.msra.mxu0 %v421
    %529 = vmatpush.bf16.msra.mxu0 %v420
    %530 = vmatpush.bf16.msra.mxu0 %v419
    %531 = vmatpush.bf16.msra.mxu0 %v418
    %532 = vmatpush.bf16.msra.mxu0 %v417
    %533 = vmatmul.bf16.gmra.mxu0 %v105
    %v534 = vpop.f32.mrf.mxu0
    %v535 = vadd.f32 %v521, %v534
    %v536 = vpop.f32.mrf.mxu0
    %v537 = vadd.f32 %v523, %v536
    %538 = vdwg.mxu0
    %539 = vmatpush.bf16.msra.mxu0 %v432
    %540 = vmatpush.bf16.msra.mxu0 %v431
    %541 = vmatpush.bf16.msra.mxu0 %v430
    %542 = vmatpush.bf16.msra.mxu0 %v429
    %543 = vmatpush.bf16.msra.mxu0 %v428
    %544 = vmatpush.bf16.msra.mxu0 %v427
    %545 = vmatpush.bf16.msra.mxu0 %v426
    %546 = vmatpush.bf16.msra.mxu0 %v425
    %547 = vmatmul.bf16.gmra.mxu0 %v106
    %v548 = vpop.f32.mrf.mxu0
    %v549 = vadd.f32 %v535, %v548
    %v550 = vpop.f32.mrf.mxu0
    %v551 = vadd.f32 %v537, %v550
    %552 = vdwg.mxu0
    %553 = vmatpush.bf16.msra.mxu0 %v440
    %554 = vmatpush.bf16.msra.mxu0 %v439
    %555 = vmatpush.bf16.msra.mxu0 %v438
    %556 = vmatpush.bf16.msra.mxu0 %v437
    %557 = vmatpush.bf16.msra.mxu0 %v436
    %558 = vmatpush.bf16.msra.mxu0 %v435
    %559 = vmatpush.bf16.msra.mxu0 %v434
    %560 = vmatpush.bf16.msra.mxu0 %v433
    %561 = vmatmul.bf16.gmra.mxu0 %v107
    %v562 = vpop.f32.mrf.mxu0
    %v563 = vadd.f32 %v549, %v562
    %v564 = vpop.f32.mrf.mxu0
    %v565 = vadd.f32 %v551, %v564
    %566 = vdwg.mxu0
    %567 = vmatpush.bf16.msra.mxu0 %v448
    %568 = vmatpush.bf16.msra.mxu0 %v447
    %569 = vmatpush.bf16.msra.mxu0 %v446
    %570 = vmatpush.bf16.msra.mxu0 %v445
    %571 = vmatpush.bf16.msra.mxu0 %v444
    %572 = vmatpush.bf16.msra.mxu0 %v443
    %573 = vmatpush.bf16.msra.mxu0 %v442
    %574 = vmatpush.bf16.msra.mxu0 %v441
    %575 = vmatmul.bf16.gmra.mxu0 %v108
    %v576 = vpop.f32.mrf.mxu0
    %v577 = vadd.f32 %v563, %v576
    %v578 = vpop.f32.mrf.mxu0
    %v579 = vadd.f32 %v565, %v578
    %580 = vdwg.mxu0
    %581 = vmatpush.bf16.msra.mxu0 %v456
    %582 = vmatpush.bf16.msra.mxu0 %v455
    %583 = vmatpush.bf16.msra.mxu0 %v454
    %584 = vmatpush.bf16.msra.mxu0 %v453
    %585 = vmatpush.bf16.msra.mxu0 %v452
    %586 = vmatpush.bf16.msra.mxu0 %v451
    %587 = vmatpush.bf16.msra.mxu0 %v450
    %588 = vmatpush.bf16.msra.mxu0 %v449
    %589 = vmatmul.bf16.gmra.mxu0 %v109
    %v590 = vpop.f32.mrf.mxu0
    %v591 = vadd.f32 %v577, %v590
    %v592 = vpop.f32.mrf.mxu0
    %v593 = vadd.f32 %v579, %v592
    %594 = vdwg.mxu0
    %595 = vmatpush.bf16.msra.mxu0 0
    %596 = vmatpush.bf16.msra.mxu0 0
    %597 = vmatpush.bf16.msra.mxu0 0
    %598 = vmatpush.bf16.msra.mxu0 0
    %599 = vmatpush.bf16.msra.mxu0 0
    %600 = vmatpush.bf16.msra.mxu0 0
    %601 = vmatpush.bf16.msra.mxu0 0
    %602 = vmatpush.bf16.msra.mxu0 %v457
    %603 = vmatmul.bf16.gmra.mxu0 %v509
    %v604 = vpop.f32.mrf.mxu0
    %v605 = vadd.f32 %v591, %v604
    %v606 = vpop.f32.mrf.mxu0
    %v607 = vadd.f32 %v593, %v606
    %608 = vdwg.mxu0
    %v609 = vmax.f32 %v605, 0.0
    %v610 = vmax.f32 %v607, 0.0
    %v611 = vpack.c.bf16 %v610, %v609
    %v612 = vld [vmem:[#allocation6] sm:$0xf]
    %v613 = vld [vmem:[#allocation6 + $0x4] sm:$0xf]
    %v614 = vld [vmem:[#allocation6 + $0x8] sm:$0xf]
    %v615 = vld [vmem:[#allocation6 + $0xc] sm:$0xf]
    %v616 = vld [vmem:[#allocation6 + $0x10] sm:$0xf]
    %v617 = vld [vmem:[#allocation6 + $0x14] sm:$0xf]
    %v618 = vld [vmem:[#allocation6 + $0x18] sm:$0xf]
    %v619 = vld [vmem:[#allocation6 + $0x1c] sm:$0xf]
    %v620 = vld [vmem:[#allocation6 + $0x20] sm:$0xf]
    %v621 = vld [vmem:[#allocation6 + $0x24] sm:$0xf]
    %v622 = vld [vmem:[#allocation6 + $0x28] sm:$0xf]
    %v623 = vld [vmem:[#allocation6 + $0x2c] sm:$0xf]
    %v624 = vld [vmem:[#allocation6 + $0x30] sm:$0xf]
    %v625 = vld [vmem:[#allocation6 + $0x34] sm:$0xf]
    %v626 = vld [vmem:[#allocation6 + $0x38] sm:$0xf]
    %v627 = vld [vmem:[#allocation6 + $0x3c] sm:$0xf]
    %v628 = vld [vmem:[%s4] sm:$0x1]
    %v630 = vperm.slane %v628, 0
    %v648 = vunpack.c.l.b16 %v612
    %v649 = vunpack.c.l.b16 %v613
    %v650 = vunpack.c.l.b16 %v614
    %v651 = vunpack.c.l.b16 %v615
    %v652 = vunpack.c.l.b16 %v616
    %v653 = vunpack.c.l.b16 %v617
    %v654 = vunpack.c.l.b16 %v618
    %v655 = vunpack.c.l.b16 %v619
    %v656 = vunpack.c.l.b16 %v620
    %v657 = vunpack.c.l.b16 %v621
    %v658 = vunpack.c.l.b16 %v622
    %v659 = vunpack.c.l.b16 %v623
    %v660 = vunpack.c.l.b16 %v624
    %v661 = vunpack.c.l.b16 %v625
    %v662 = vunpack.c.l.b16 %v626
    %v663 = vunpack.c.l.b16 %v627
    %v664 = vpack.c.b16 %v649, %v648
    %v665 = vpack.c.b16 %v651, %v650
    %v666 = vpack.c.b16 %v653, %v652
    %v667 = vpack.c.b16 %v655, %v654
    %v668 = vpack.c.b16 %v657, %v656
    %v669 = vpack.c.b16 %v659, %v658
    %v670 = vpack.c.b16 %v661, %v660
    %v671 = vpack.c.b16 %v663, %v662
    %680 = vmatpush.bf16.msra.mxu0 %v671
    %681 = vmatpush.bf16.msra.mxu0 %v670
    %682 = vmatpush.bf16.msra.mxu0 %v669
    %683 = vmatpush.bf16.msra.mxu0 %v668
    %684 = vmatpush.bf16.msra.mxu0 %v667
    %685 = vmatpush.bf16.msra.mxu0 %v666
    %686 = vmatpush.bf16.msra.mxu0 %v665
    %687 = vmatpush.bf16.msra.mxu0 %v664
    %688 = vmatmul.bf16.gmra.mxu0 %v611
    %v689 = vpop.f32.mrf.mxu0
    %v690 = vadd.f32 %v630, %v689
    %v691 = vpop.f32.mrf.mxu0
    %v692 = vadd.f32 %v630, %v691
    %693 = vdwg.mxu0
    %v694 = vmax.f32 %v690, 0.0
    %v695 = vmax.f32 %v692, 0.0
    %v696 = vpack.c.bf16 %v695, %v694
    %v697 = vld [vmem:[#allocation7] sm:$0xf]
    %v698 = vld [vmem:[#allocation7 + $0x4] sm:$0xf]
    %v699 = vld [vmem:[#allocation7 + $0x8] sm:$0xf]
    %v700 = vld [vmem:[#allocation7 + $0xc] sm:$0xf]
    %v701 = vld [vmem:[#allocation7 + $0x10] sm:$0xf]
    %v702 = vld [vmem:[#allocation7 + $0x14] sm:$0xf]
    %v703 = vld [vmem:[#allocation7 + $0x18] sm:$0xf]
    %v704 = vld [vmem:[#allocation7 + $0x1c] sm:$0xf]
    %v705 = vld [vmem:[#allocation7 + $0x20] sm:$0xf]
    %v706 = vld [vmem:[#allocation7 + $0x24] sm:$0xf]
    %v707 = vld [vmem:[#allocation7 + $0x28] sm:$0xf]
    %v708 = vld [vmem:[#allocation7 + $0x2c] sm:$0xf]
    %v709 = vld [vmem:[#allocation7 + $0x30] sm:$0xf]
    %v710 = vld [vmem:[#allocation7 + $0x34] sm:$0xf]
    %v711 = vld [vmem:[#allocation7 + $0x38] sm:$0xf]
    %v712 = vld [vmem:[#allocation7 + $0x3c] sm:$0xf]
    %v713 = vld [vmem:[%s6] sm:$0x1]
    %v715 = vperm.slane %v713, 0
    %v733 = vunpack.c.l.b16 %v697
    %v734 = vunpack.c.l.b16 %v698
    %v735 = vunpack.c.l.b16 %v699
    %v736 = vunpack.c.l.b16 %v700
    %v737 = vunpack.c.l.b16 %v701
    %v738 = vunpack.c.l.b16 %v702
    %v739 = vunpack.c.l.b16 %v703
    %v740 = vunpack.c.l.b16 %v704
    %v741 = vunpack.c.l.b16 %v705
    %v742 = vunpack.c.l.b16 %v706
    %v743 = vunpack.c.l.b16 %v707
    %v744 = vunpack.c.l.b16 %v708
    %v745 = vunpack.c.l.b16 %v709
    %v746 = vunpack.c.l.b16 %v710
    %v747 = vunpack.c.l.b16 %v711
    %v748 = vunpack.c.l.b16 %v712
    %v749 = vpack.c.b16 %v734, %v733
    %v750 = vpack.c.b16 %v736, %v735
    %v751 = vpack.c.b16 %v738, %v737
    %v752 = vpack.c.b16 %v740, %v739
    %v753 = vpack.c.b16 %v742, %v741
    %v754 = vpack.c.b16 %v744, %v743
    %v755 = vpack.c.b16 %v746, %v745
    %v756 = vpack.c.b16 %v748, %v747
    %765 = vmatpush.bf16.msra.mxu0 %v756
    %766 = vmatpush.bf16.msra.mxu0 %v755
    %767 = vmatpush.bf16.msra.mxu0 %v754
    %768 = vmatpush.bf16.msra.mxu0 %v753
    %769 = vmatpush.bf16.msra.mxu0 %v752
    %770 = vmatpush.bf16.msra.mxu0 %v751
    %771 = vmatpush.bf16.msra.mxu0 %v750
    %772 = vmatpush.bf16.msra.mxu0 %v749
    %773 = vmatmul.bf16.gmra.mxu0 %v696
    %v774 = vpop.f32.mrf.mxu0
    %v775 = vadd.f32 %v715, %v774
    %v776 = vpop.f32.mrf.mxu0
    %v777 = vadd.f32 %v715, %v776
    %778 = vdwg.mxu0
    %v779 = vpack.c.bf16 %v775, %v775
    %v780 = vpack.c.bf16 %v777, %v777
    %781 = vst [vmem:[%s7] sm:$0xf] %v779
    %782 = vst [vmem:[%s7 + $0x4] sm:$0xf] %v780
    // Predicated region
    $region46: #{_forward.1} parent=1 // pred_check
      _
    $region47: #{_forward.1} parent=1 // pred_check_branch
      %784 = sbr.rel (0) target = $region49
    $region48: #{_forward.1} parent=1 // pred_region
      _
    $region49: #{_forward.1} parent=1 // pred_fallthru
      _
    // Predicated region
    $region50: #{_forward.1} parent=1 // pred_check
      _
    $region51: #{_forward.1} parent=1 // pred_check_branch
      %786 = sbr.rel (0) target = $region53
    $region52: #{_forward.1} parent=1 // pred_region
      _
    $region53: #{_forward.1} parent=1 // pred_fallthru
      _
    %787 = vsyncpa [#allocation3], 1
    %788 = vsyncpa [#allocation5], 1
    %789 = vsyncpa [#allocation8], 1

</llo_original>
